<compile_context>
chip_gen: v7x
topology: tpu7x:2x2x1
jax: 0.10.0
libtpu: 0.0.40
codegen_flags: <defaults>
</compile_context>

<pallas_src>
import functools

import jax
import jax.numpy as jnp
from jax import lax
from jax.experimental import pallas as pl
from jax.experimental.pallas import tpu as pltpu


# ----------------------------------------------------------------------------
# Kernels
# ----------------------------------------------------------------------------
def _unpartition_kernel(win_ref, o_ref, *, nW, ws):
    # win_ref: (nW, ws, ws, C)  one window-row of one batch element (VMEM)
    # o_ref:   (1, ws, W, C)    matching output row-strip (VMEM)
    # Pure window-reverse: each window lands at an aligned (ws, C)-wide slot.
    for j in range(nW):
        o_ref[0, :, j * ws:(j + 1) * ws, :] = win_ref[j]


def _unpartition_shift_kernel(prev_ref, cur_ref, o_ref, *, nW, ws, shift):
    # prev_ref: (nW, shift, ws, C)       bottom `shift` rows of window-row (i-1) % nH
    # cur_ref:  (nW, ws - shift, ws, C)  top `ws - shift` rows of window-row i
    # o_ref:    (1, ws, W, C)            output row-strip i
    #
    # out[h, w] = img[(h - shift) % H, (w - shift) % W].
    # The H part of the roll is already handled by the BlockSpecs (prev/cur
    # fetch); here we only do the W roll, per output window column:
    #   sel  = where(col < ws - shift, window[j], window[j-1])   (VPU select)
    #   blk  = pltpu.roll(sel, shift, axis=1)                    (XLU sublane roll)
    # so every store is a full-width, sublane-aligned vst at column j*ws.
    C = o_ref.shape[-1]
    keep = ws - shift
    mask_top = lax.broadcasted_iota(jnp.int32, (shift, ws, C), 1) < keep
    mask_bot = lax.broadcasted_iota(jnp.int32, (keep, ws, C), 1) < keep

    # nW is small for Swin-style shapes; a static loop keeps all offsets static
    # and aligned.  (For very large nW a fori_loop with pl.ds would be used.)
    for j in range(nW):
        jl = (j + nW - 1) % nW  # left (W-wrap) neighbour window column

        # Output strip rows [0, shift) come from `prev`.
        sel_t = jnp.where(mask_top, prev_ref[j], prev_ref[jl])
        o_ref[0, 0:shift, j * ws:(j + 1) * ws, :] = pltpu.roll(sel_t, shift, axis=1)

        # Output strip rows [shift, ws) come from `cur`.
        sel_b = jnp.where(mask_bot, cur_ref[j], cur_ref[jl])
        o_ref[0, shift:ws, j * ws:(j + 1) * ws, :] = pltpu.roll(sel_b, shift, axis=1)


# ----------------------------------------------------------------------------
# Wrapper
# ----------------------------------------------------------------------------
@functools.partial(jax.jit,
                   static_argnames=("shape", "window_size", "cyc_shift"))
def uncyc_shft_wndw_partition(windows, shape, window_size=8, cyc_shift=True):
    """Equivalent of UnCycShftWndwPartition.forward(windows, shape)."""
    B, H, W, C = shape
    ws = window_size
    if H % ws != 0 or W % ws != 0:
        raise ValueError(f"H ({H}) and W ({W}) must be divisible by "
                         f"window_size ({ws}).")
    nH, nW = H // ws, W // ws
    # torch .view is a row-major reinterpretation; present the same bytes as
    # (B*nH*nW, ws, ws, C) regardless of the incoming (compatible) layout.
    windows = windows.reshape(B * nH * nW, ws, ws, C)

    # The PyTorch module hard-codes shifts = (8 // 2, 8 // 2), independent of ws.
    shift = 8 // 2

    itemsize = jnp.dtype(windows.dtype).itemsize
    cost = pl.CostEstimate(flops=0, transcendentals=0,
                           bytes_accessed=2 * B * H * W * C * itemsize)

    grid = (B, nH)
    out_shape = jax.ShapeDtypeStruct((B, H, W, C), windows.dtype)
    out_specs = pl.BlockSpec((1, ws, W, C), lambda b, i: (b, i, 0, 0))

    if cyc_shift:
        if shift >= ws or ws % shift != 0:
            raise ValueError(f"cyclic shift {shift} requires window_size ({ws}) "
                             f"to be a larger multiple of {shift}.")
        prev_row_blk = ws // shift - 1  # block index selecting rows [ws-shift, ws)
        in_specs = [
            # Bottom `shift` rows of every window in window-row (i-1) % nH.
            pl.BlockSpec((nW, shift, ws, C),
                         lambda b, i: (b * nH + (i + nH - 1) % nH,
                                       prev_row_blk, 0, 0)),
            # Top `ws - shift` rows of every window in window-row i.
            pl.BlockSpec((nW, ws - shift, ws, C),
                         lambda b, i: (b * nH + i, 0, 0, 0)),
        ]
        kernel = functools.partial(_unpartition_shift_kernel,
                                   nW=nW, ws=ws, shift=shift)
        operands = (windows, windows)
    else:
        in_specs = [pl.BlockSpec((nW, ws, ws, C),
                                 lambda b, i: (b * nH + i, 0, 0, 0))]
        kernel = functools.partial(_unpartition_kernel, nW=nW, ws=ws)
        operands = (windows,)

    # Per-step block footprint (inputs sum to exactly one window-row + one
    # output strip); x2 for double buffering, plus headroom.
    block_bytes = (nW * ws * ws * C + ws * W * C) * itemsize
    vmem_limit = int(min(64 << 20, max(8 << 20, 4 * block_bytes + (2 << 20))))

    return pl.pallas_call(
        kernel,
        out_shape=out_shape,
        grid_spec=pltpu.PrefetchScalarGridSpec(
            num_scalar_prefetch=0,
            grid=grid,
            in_specs=in_specs,
            out_specs=out_specs),
        compiler_params=pltpu.CompilerParams(
            # Both axes are independent row-strips -> shardable across cores.
            dimension_semantics=("parallel", "parallel"),
            vmem_limit_bytes=vmem_limit),
        cost_estimate=cost,
    )(*operands)


# ----------------------------------------------------------------------------
# Pure-JAX reference (mirrors the PyTorch module exactly)
# ----------------------------------------------------------------------------
def _reference(windows, shape, window_size, cyc_shift):
    B, H, W, C = shape
    ws = window_size
    x = windows.reshape(B, H // ws, W // ws, ws, ws, C)
    x = jnp.transpose(x, (0, 1, 3, 2, 4, 5)).reshape(B, H, W, C)
    if cyc_shift:
        x = jnp.roll(x, shift=(8 // 2, 8 // 2), axis=(1, 2))
    return x


if __name__ == "__main__":
    key = jax.random.PRNGKey(0)

    # Small shapes consistent with the module: window_size=8 (implied by the
    # hard-coded 8//2 shift), B=2, H=W=16, C=128 (lane-dense channels-last).
    B, H, W, C = 2, 16, 16, 128
    ws = 8
    nH, nW = H // ws, W // ws
    shape = (B, H, W, C)

    windows = jax.random.normal(key, (B * nH * nW, ws, ws, C), jnp.float32)

    ok = True
    for cyc in (False, True):
        out = uncyc_shft_wndw_partition(windows, shape,
                                        window_size=ws, cyc_shift=cyc)
        out = jax.block_until_ready(out)
        ref = _reference(windows, shape, ws, cyc)
        ok = ok and (out.shape == (B, H, W, C))
        ok = ok and bool(jnp.array_equal(out, ref))

    assert ok
    print("KERNEL_OK")
</pallas_src>

<mosaic_0001>
module attributes {stable_mosaic.version = 11 : i64} {
  func.func @_unpartition_kernel(%arg0: i32, %arg1: i32, %arg2: memref<2x8x8x128xf32, #tpu.memory_space<vmem>>, %arg3: memref<1x8x16x128xf32, #tpu.memory_space<vmem>>) attributes {dimension_semantics = [#tpu.dimension_semantics<parallel>, #tpu.dimension_semantics<parallel>], iteration_bounds = array<i64: 2, 2>, scalar_prefetch = 0 : i64, scratch_operands = 0 : i64, tpu.core_type = #tpu.core_type<tc>, window_params = [{transform_indices = @transform_0, window_bounds = array<i64: 2, 8, 8, 128>}, {transform_indices = @transform_1, window_bounds = array<i64: 1, 8, 16, 128>}]} {
    %c0 = arith.constant 0 : index
    %c0_0 = arith.constant 0 : index
    %c0_1 = arith.constant 0 : index
    %c0_2 = arith.constant 0 : index
    %0 = vector.load %arg2[%c0, %c0_0, %c0_1, %c0_2] : memref<2x8x8x128xf32, #tpu.memory_space<vmem>>, vector<1x8x8x128xf32>
    %1 = vector.shape_cast %0 : vector<1x8x8x128xf32> to vector<8x8x128xf32>
    %c0_3 = arith.constant 0 : index
    %c0_4 = arith.constant 0 : index
    %c0_5 = arith.constant 0 : index
    %c0_6 = arith.constant 0 : index
    %2 = vector.load %arg3[%c0_3, %c0_4, %c0_5, %c0_6] : memref<1x8x16x128xf32, #tpu.memory_space<vmem>>, vector<1x8x8x128xf32>
    %3 = vector.shape_cast %2 : vector<1x8x8x128xf32> to vector<8x8x128xf32>
    %4 = vector.shape_cast %1 : vector<8x8x128xf32> to vector<1x8x8x128xf32>
    tpu.vector_store %arg3[%c0_3, %c0_4, %c0_5, %c0_6], %4 {strides = array<i32>} : memref<1x8x16x128xf32, #tpu.memory_space<vmem>>, vector<1x8x8x128xf32>,
    %c1 = arith.constant 1 : index
    %c0_7 = arith.constant 0 : index
    %c0_8 = arith.constant 0 : index
    %c0_9 = arith.constant 0 : index
    %5 = vector.load %arg2[%c1, %c0_7, %c0_8, %c0_9] : memref<2x8x8x128xf32, #tpu.memory_space<vmem>>, vector<1x8x8x128xf32>
    %6 = vector.shape_cast %5 : vector<1x8x8x128xf32> to vector<8x8x128xf32>
    %c0_10 = arith.constant 0 : index
    %c0_11 = arith.constant 0 : index
    %c8 = arith.constant 8 : index
    %c0_12 = arith.constant 0 : index
    %7 = vector.load %arg3[%c0_10, %c0_11, %c8, %c0_12] : memref<1x8x16x128xf32, #tpu.memory_space<vmem>>, vector<1x8x8x128xf32>
    %8 = vector.shape_cast %7 : vector<1x8x8x128xf32> to vector<8x8x128xf32>
    %9 = vector.shape_cast %6 : vector<8x8x128xf32> to vector<1x8x8x128xf32>
    tpu.vector_store %arg3[%c0_10, %c0_11, %c8, %c0_12], %9 {strides = array<i32>} : memref<1x8x16x128xf32, #tpu.memory_space<vmem>>, vector<1x8x8x128xf32>,
    return
  }
  func.func @transform_0(%arg0: i32, %arg1: i32) -> (i32, i32, i32, i32) {
    %c2_i32 = arith.constant 2 : i32
    %0 = arith.muli %arg0, %c2_i32 : i32
    %1 = arith.addi %0, %arg1 : i32
    %c0_i32 = arith.constant 0 : i32
    %c0_i32_0 = arith.constant 0 : i32
    %c0_i32_1 = arith.constant 0 : i32
    %c0_i32_2 = arith.constant 0 : i32
    return %1, %c0_i32, %c0_i32_0, %c0_i32_1 : i32, i32, i32, i32
  }
  func.func @transform_1(%arg0: i32, %arg1: i32) -> (i32, i32, i32, i32) {
    %c0_i32 = arith.constant 0 : i32
    %c0_i32_0 = arith.constant 0 : i32
    %c0_i32_1 = arith.constant 0 : i32
    return %arg0, %arg1, %c0_i32, %c0_i32_0 : i32, i32, i32, i32
  }
}

</mosaic_0001>

<llo_original>
// kernel: uncyc_shft_wndw_partition.1
$region0: #{uncyc_shft_wndw_partition.1}
  #allocation0 [shape = 'u32[]', space=smem, size = 0x4, offset = 0x4, fixed_abs, tag = 'smem constant byte address 0x4 - core index']
  #allocation1 [shape = 'u32[144,128]{1,0:T(1,128)}', space=vmem, size = 0x12000, scoped, tag = 'internal scratch']
  %s0 = inlined_call_operand.hbm [shape: f32[8,8,8,128], index: 0, kind: input, shape index: {}]
  %s1 = inlined_call_operand.hbm [shape: f32[2,16,16,128], index: 1, kind: output, shape index: {}]
  %s2 = sld [smem:[#allocation0]]
  $region41: #{uncyc_shft_wndw_partition.1} parent=0
    _
  %s4 = ssub.s32 1, %s2
  %s5 = scalar_select 0, %s4, %s2
  $region1: #{uncyc_shft_wndw_partition.1} parent=0
    #allocation2 [shape = 'u8[131072]{0}', space=vmem, size = 0x20000, scoped, tag = 'input window, operand 0']
    #allocation3 [shape = 's32[2]{0}', space=sflag, size = 0x8, scoped, tag = 'scoped memory for uncyc_shft_wndw_partition.1']
    #allocation4 [shape = 's32[2]{0}', space=sflag, size = 0x8, scoped, tag = 'scoped memory for uncyc_shft_wndw_partition.1']
    #allocation5 [shape = 'u8[131072]{0}', space=vmem, size = 0x20000, scoped, tag = 'output window, operand 0']
    %6 = vsyncpa [#allocation3], 0
    %s7 = scalar_lea.sflag [#allocation3], 1
    %8 = vsyncpa %s7, 0
    %9 = vsyncpa [#allocation4], 0
    %s10 = scalar_lea.sflag [#allocation4], 1
    %11 = vsyncpa %s10, 0
    loop: start=0, step=1, limit=6
    $region2: #{uncyc_shft_wndw_partition.1} parent=1 // loop_pre_header
      _
    $region3: #{uncyc_shft_wndw_partition.1} parent=1 // loop_header
      %s13 = sphi 0, %s17
      %p14 = scmp.ge.s32.totalorder %s13, 6
      %s20 = sphi 0, %s32
      %s21 = sphi 0, %s28
      %s22 = sphi 0, %s20
      %s23 = sphi 0, %s21
      %s24 = sphi 0, %s22
      %s25 = sphi 0, %s23
      %s39 = sphi 0, %s41
      %s42 = sphi 0, %s39
      %s43 = sphi 0, %s42
      %s59 = sphi 0, %s43
      %s67 = sphi 0, %s69
      %s70 = sphi 0, %s67
      %s71 = sphi 0, %s70
      %s87 = sphi 0, %s71
    $region4: #{uncyc_shft_wndw_partition.1} parent=1 // loop_header_branch
      %16 = sbr.rel (%p14) target = $region8
    $region5: #{uncyc_shft_wndw_partition.1} parent=1 // loop_body
      %s18 = ssub.s32 %s13, 1
      %s19 = ssub.s32 %s13, 2
      %s26 = sadd.s32 1, %s21
      %p27 = scmp.ge.s32.totalorder %s26, 2
      %s28 = scalar_select %p27, 0, %s26
      %s29 = sadd.s32 1, %s20
      %s30 = scalar_select %p27, %s29, %s20
      %p31 = scmp.ge.s32.totalorder %s30, 2
      %s32 = scalar_select %p31, 0, %s30
      %s33 = smul.u32 %s20, 2
      %s34 = sadd.s32 %s33, %s21
      %s35 = smul.u32 %s32, 2
      %s36 = sadd.s32 %s35, %s28
      %s37 = ssub.s32 %s34, %s36
      %p38 = scmp.eq.s32.totalorder %s37, 0
      %s40 = sadd.s32 %s39, 1
      %s41 = scalar_select %p38, %s39, %s40
      %p44 = pneg %p38
      %p45 = scmp.eq.s32.totalorder %s13, 3
      %p46 = por %p44, %p45
      %p47 = scmp.ne.s32.totalorder %s39, %s42
      %p48 = scmp.eq.s32.totalorder %s13, 0
      %p49 = por %p47, %p48
      %p50 = scmp.ne.s32.totalorder %s39, %s42
      %p51 = scmp.eq.s32.totalorder %s18, 3
      %p52 = por %p50, %p51
      %p53 = scmp.ne.s32.totalorder %s42, %s43
      %p54 = scmp.eq.s32.totalorder %s18, 0
      %p55 = por %p53, %p54
      %p56 = scmp.ne.s32.totalorder %s42, %s43
      %p57 = scmp.eq.s32.totalorder %s19, 3
      %p58 = por %p56, %p57
      %p60 = scmp.ne.s32.totalorder %s43, %s59
      %p61 = scmp.eq.s32.totalorder %s19, 0
      %p62 = por %p60, %p61
      %s63 = ssub.s32 %s20, %s32
      %s64 = ssub.s32 %s21, %s28
      %s65 = sor.u32 %s63, %s64
      %p66 = scmp.eq.s32.totalorder %s65, 0
      %s68 = sadd.s32 %s67, 1
      %s69 = scalar_select %p66, %s67, %s68
      %p72 = pneg %p66
      %p73 = scmp.eq.s32.totalorder %s13, 3
      %p74 = por %p72, %p73
      %p75 = scmp.ne.s32.totalorder %s67, %s70
      %p76 = scmp.eq.s32.totalorder %s13, 0
      %p77 = por %p75, %p76
      %p78 = scmp.ne.s32.totalorder %s67, %s70
      %p79 = scmp.eq.s32.totalorder %s18, 3
      %p80 = por %p78, %p79
      %p81 = scmp.ne.s32.totalorder %s70, %s71
      %p82 = scmp.eq.s32.totalorder %s18, 0
      %p83 = por %p81, %p82
      %p84 = scmp.ne.s32.totalorder %s70, %s71
      %p85 = scmp.eq.s32.totalorder %s19, 3
      %p86 = por %p84, %p85
      %p88 = scmp.ne.s32.totalorder %s71, %s87
      %p89 = scmp.eq.s32.totalorder %s19, 0
      %p90 = por %p88, %p89
      %p91 = scmp.le.s32.totalorder 1, %s13
      %p92 = scmp.lt.s32.totalorder %s13, 5
      %p93 = pnand %p91, %p92
      %p94 = pneg %p93
      // Predicated region
      $region9: #{uncyc_shft_wndw_partition.1} parent=5 // pred_check
        _
      $region10: #{uncyc_shft_wndw_partition.1} parent=5 // pred_check_branch
        %96 = sbr.rel (%p93) target = $region12
      $region11: #{uncyc_shft_wndw_partition.1} parent=5 // pred_region
        %s97 = ssub.s32 %s13, 1
      $region12: #{uncyc_shft_wndw_partition.1} parent=5 // pred_fallthru
        _
      %p98 = scmp.lt.s32.totalorder %s13, 4
      // Predicated region
      $region13: #{uncyc_shft_wndw_partition.1} parent=5 // pred_check
        %p99 = pneg %p98
      $region14: #{uncyc_shft_wndw_partition.1} parent=5 // pred_check_branch
        %101 = sbr.rel (%p99) target = $region16
      $region15: #{uncyc_shft_wndw_partition.1} parent=5 // pred_region
        // Predicated region
        $region17: #{uncyc_shft_wndw_partition.1} parent=15 // pred_check
          %p102 = pneg %p49
        $region18: #{uncyc_shft_wndw_partition.1} parent=15 // pred_check_branch
          %104 = sbr.rel (%p102) target = $region20
        $region19: #{uncyc_shft_wndw_partition.1} parent=15 // pred_region
          %s105 = sand.u32 %s39, 1
          %s106 = scalar_lea.sflag [#allocation3], %s105
          %s107 = sand.u32 %s39, 1
          %s108 = smul.addr %s107, 128
          %s109 = scalar_lea.vmem [#allocation2], %s108
          %s110 = smul.u32 %s20, 2
          %s111 = sadd.s32 %s110, %s21
          %s112 = smul.u32 2, %s111
          %s114 = ssub.s32 2048, 2048
          %115 = vsyncadd %s106, %s114
          %s116 = smul.addr %s112, 8
          %s117 = smul.addr %s116, 128
          %s118 = scalar_lea.hbm %s0, %s117
          %s119 = sshll.u32 %s109, 4
          %s120 = int_to_ptr.vmem [resolvable:$true] %s119
          %125 = dma.hbm_to_vmem [thread:$0]  %s118, 2048, %s120, %s106, 128, 128, 8
        $region20: #{uncyc_shft_wndw_partition.1} parent=15 // pred_fallthru
          _
      $region16: #{uncyc_shft_wndw_partition.1} parent=5 // pred_fallthru
        _
      %p126 = scmp.le.s32.totalorder 1, %s13
      %p127 = scmp.lt.s32.totalorder %s13, 5
      %p128 = pnand %p126, %p127
      %p129 = pneg %p128
      // Predicated region
      $region21: #{uncyc_shft_wndw_partition.1} parent=5 // pred_check
        _
      $region22: #{uncyc_shft_wndw_partition.1} parent=5 // pred_check_branch
        %131 = sbr.rel (%p128) target = $region24
      $region23: #{uncyc_shft_wndw_partition.1} parent=5 // pred_region
        %s132 = ssub.s32 %s13, 1
        %s133 = sand.u32 %s42, 1
        %s134 = scalar_lea.sflag [#allocation3], %s133
        %s135 = sand.u32 %s42, 1
        %s136 = smul.addr %s135, 128
        %s137 = scalar_lea.vmem [#allocation2], %s136
        // Predicated region
        $region25: #{uncyc_shft_wndw_partition.1} parent=23 // pred_check
          %p138 = pneg %p55
        $region26: #{uncyc_shft_wndw_partition.1} parent=23 // pred_check_branch
          %140 = sbr.rel (%p138) target = $region28
        $region27: #{uncyc_shft_wndw_partition.1} parent=23 // pred_region
          %141 = dma.done %s134, 2048
        $region28: #{uncyc_shft_wndw_partition.1} parent=23 // pred_fallthru
          _
        %s142 = sand.u32 %s42, 1
        %s143 = scalar_lea.sflag [#allocation3], %s142
        %s144 = sand.u32 %s42, 1
        %s145 = smul.addr %s144, 128
        %s146 = scalar_lea.vmem [#allocation2], %s145
        %p147 = pneg %p55
        %p148 = pneg %p52
        %p149 = pneg %p83
        %p150 = pneg %p80
        %s151 = sand.u32 %s70, 1
        %s152 = scalar_lea.sflag [#allocation4], %s151
        %s153 = sand.u32 %s70, 1
        %s154 = smul.addr %s153, 128
        %s155 = scalar_lea.vmem [#allocation5], %s154
        %s156 = smul.u32 %s22, 2
        %s157 = sadd.s32 %s156, %s23
        %s158 = smul.u32 2, %s157
        %s159 = smul.u32 8, %s23
        %v160 = vld [vmem:[%s137] sm:$0xff]
        %v161 = vld [vmem:[%s137 + $0x8] sm:$0xff]
        %v162 = vld [vmem:[%s137 + $0x10] sm:$0xff]
        %v163 = vld [vmem:[%s137 + $0x18] sm:$0xff]
        %v164 = vld [vmem:[%s137 + $0x20] sm:$0xff]
        %v165 = vld [vmem:[%s137 + $0x28] sm:$0xff]
        %v166 = vld [vmem:[%s137 + $0x30] sm:$0xff]
        %v167 = vld [vmem:[%s137 + $0x38] sm:$0xff]
        %168 = vst [vmem:[%s155] sm:$0xff] %v160
        %169 = vst [vmem:[%s155 + $0x10] sm:$0xff] %v161
        %170 = vst [vmem:[%s155 + $0x20] sm:$0xff] %v162
        %171 = vst [vmem:[%s155 + $0x30] sm:$0xff] %v163
        %172 = vst [vmem:[%s155 + $0x40] sm:$0xff] %v164
        %173 = vst [vmem:[%s155 + $0x50] sm:$0xff] %v165
        %174 = vst [vmem:[%s155 + $0x60] sm:$0xff] %v166
        %175 = vst [vmem:[%s155 + $0x70] sm:$0xff] %v167
        %s176 = scalar_lea.vmem %s137, 64 [#allocation2]
        %v177 = vld [vmem:[%s176] sm:$0xff]
        %v178 = vld [vmem:[%s176 + $0x8] sm:$0xff]
        %v179 = vld [vmem:[%s176 + $0x10] sm:$0xff]
        %v180 = vld [vmem:[%s176 + $0x18] sm:$0xff]
        %v181 = vld [vmem:[%s176 + $0x20] sm:$0xff]
        %v182 = vld [vmem:[%s176 + $0x28] sm:$0xff]
        %v183 = vld [vmem:[%s176 + $0x30] sm:$0xff]
        %v184 = vld [vmem:[%s176 + $0x38] sm:$0xff]
        %185 = vst [vmem:[%s155 + $0x8] sm:$0xff] %v177
        %186 = vst [vmem:[%s155 + $0x18] sm:$0xff] %v178
        %187 = vst [vmem:[%s155 + $0x28] sm:$0xff] %v179
        %188 = vst [vmem:[%s155 + $0x38] sm:$0xff] %v180
        %189 = vst [vmem:[%s155 + $0x48] sm:$0xff] %v181
        %190 = vst [vmem:[%s155 + $0x58] sm:$0xff] %v182
        %191 = vst [vmem:[%s155 + $0x68] sm:$0xff] %v183
        %192 = vst [vmem:[%s155 + $0x78] sm:$0xff] %v184
        %s193 = sand.u32 %s70, 1
        %s194 = scalar_lea.sflag [#allocation4], %s193
        %s195 = sand.u32 %s70, 1
        %s196 = smul.addr %s195, 128
        %s197 = scalar_lea.vmem [#allocation5], %s196
        // Predicated region
        $region29: #{uncyc_shft_wndw_partition.1} parent=23 // pred_check
          %p198 = pneg %p80
        $region30: #{uncyc_shft_wndw_partition.1} parent=23 // pred_check_branch
          %200 = sbr.rel (%p198) target = $region32
        $region31: #{uncyc_shft_wndw_partition.1} parent=23 // pred_region
          %s201 = smul.u32 8, %s23
          %s203 = ssub.s32 2048, 2048
          %204 = vsyncadd %s194, %s203
          %s205 = smul.addr %s201, 2
          %s206 = smul.addr %s22, 32
          %s207 = sadd.s32 %s205, %s206
          %s208 = smul.addr %s207, 128
          %s209 = scalar_lea.hbm %s1, %s208
          %s210 = sshll.u32 %s197, 4
          %s211 = int_to_ptr.vmem [resolvable:$true] %s210
          %216 = dma.vmem_to_hbm [thread:$0]  %s211, 2048, %s209, %s194, 128, 128, 8
        $region32: #{uncyc_shft_wndw_partition.1} parent=23 // pred_fallthru
          _
      $region24: #{uncyc_shft_wndw_partition.1} parent=5 // pred_fallthru
        _
      %p217 = scmp.le.s32.totalorder 2, %s13
      // Predicated region
      $region33: #{uncyc_shft_wndw_partition.1} parent=5 // pred_check
        %p218 = pneg %p217
      $region34: #{uncyc_shft_wndw_partition.1} parent=5 // pred_check_branch
        %220 = sbr.rel (%p218) target = $region36
      $region35: #{uncyc_shft_wndw_partition.1} parent=5 // pred_region
        %s221 = ssub.s32 %s13, 2
        // Predicated region
        $region37: #{uncyc_shft_wndw_partition.1} parent=35 // pred_check
          %p222 = pneg %p86
        $region38: #{uncyc_shft_wndw_partition.1} parent=35 // pred_check_branch
          %224 = sbr.rel (%p222) target = $region40
        $region39: #{uncyc_shft_wndw_partition.1} parent=35 // pred_region
          %s225 = sand.u32 %s71, 1
          %s226 = scalar_lea.sflag [#allocation4], %s225
          %s227 = sand.u32 %s71, 1
          %s228 = smul.addr %s227, 128
          %s229 = scalar_lea.vmem [#allocation5], %s228
          %230 = dma.done %s226, 2048
        $region40: #{uncyc_shft_wndw_partition.1} parent=35 // pred_fallthru
          _
      $region36: #{uncyc_shft_wndw_partition.1} parent=5 // pred_fallthru
        _
    $region6: #{uncyc_shft_wndw_partition.1} parent=1 // loop_footer
      %s17 = sadd.s32 1, %s13
    $region7: #{uncyc_shft_wndw_partition.1} parent=1 // loop_footer_branch
      %12 = sbr.rel target = $region3
    $region8: #{uncyc_shft_wndw_partition.1} parent=1 // loop_exit
      _
    %231 = vsyncpa [#allocation3], 1
    %s232 = scalar_lea.sflag [#allocation3], 1
    %233 = vsyncpa %s232, 1
    %234 = vsyncpa [#allocation4], 1
    %s235 = scalar_lea.sflag [#allocation4], 1
    %236 = vsyncpa %s235, 1

</llo_original>
